<compile_context>
chip_gen: v5e
topology: v5e:2x2
jax: 0.10.0
libtpu: 0.0.40
codegen_flags: <defaults>
</compile_context>

<pallas_src>
import jax
import jax.numpy as jnp
from jax.experimental import pallas as pl
from jax.experimental.pallas import tpu as pltpu

IN_FEATURES = 28 * 28      # 784
HIDDEN = 64
NUM_CLASSES = 10

H_PAD = 128                # padded hidden width (lane-dense)
LOGIT_PAD = 128            # padded logit width inside the kernel (vregs only)
TILE_B_MAX = 1024          # max batch tile (sweep-validated sweet spot)


def mlp_kernel(x_ref, w1_ref, b1_ref, w2_ref, b2_ref,
               w3_ref, b3_ref, w4_ref, b4_ref, o_ref):
    # fc1 + relu   (x is native 784-wide; padded hidden columns are exact 0s)
    h = jnp.dot(x_ref[...], w1_ref[...], preferred_element_type=jnp.float32)
    h = jnp.maximum(h + b1_ref[...], 0.0)
    # fc2 + relu
    h = jnp.dot(h, w2_ref[...], preferred_element_type=jnp.float32)
    h = jnp.maximum(h + b2_ref[...], 0.0)
    # fc3 + relu
    h = jnp.dot(h, w3_ref[...], preferred_element_type=jnp.float32)
    h = jnp.maximum(h + b3_ref[...], 0.0)
    # fc4 (no relu) — logits stay 128-wide in vregs only.
    logits = jnp.dot(h, w4_ref[...], preferred_element_type=jnp.float32) + b4_ref[...]
    # Mask padded logit lanes (cols >= 10) so they do not perturb the softmax.
    col = jax.lax.broadcasted_iota(jnp.int32, logits.shape, 1)
    logits = jnp.where(col < NUM_CLASSES, logits, jnp.float32(-1e30))
    # log_softmax over dim=1 (feature axis)
    m = jnp.max(logits, axis=1, keepdims=True)
    shifted = logits - m
    lse = jnp.log(jnp.sum(jnp.exp(shifted), axis=1, keepdims=True))
    # Store only the 10 real classes (narrow, masked store; free when
    # bandwidth-bound, and 12.8x less writeback than the 128-wide slab).
    o_ref[...] = (shifted - lse)[:, :NUM_CLASSES]


def _round_up(a, m):
    return (a + m - 1) // m * m


def _pad2(a, rows, cols):
    return jnp.zeros((rows, cols), jnp.float32).at[:a.shape[0], :a.shape[1]].set(a)


def pad_params(params):
    """Pad weights/biases once (outside the per-call path)."""
    w1, b1, w2, b2, w3, b3, w4, b4 = params
    return (
        _pad2(w1, IN_FEATURES, H_PAD), _pad2(b1, 1, H_PAD),
        _pad2(w2, H_PAD, H_PAD),       _pad2(b2, 1, H_PAD),
        _pad2(w3, H_PAD, H_PAD),       _pad2(b3, 1, H_PAD),
        _pad2(w4, H_PAD, LOGIT_PAD),   _pad2(b4, 1, LOGIT_PAD),
    )


@jax.jit
def net_forward(x, padded_params):
    w1p, b1p, w2p, b2p, w3p, b3p, w4p, b4p = padded_params
    B, K = x.shape
    assert K == IN_FEATURES

    # Adaptive batch tiling: small B -> one tiny tile; modest/large B -> >=2
    # tiles (keeps both v7x TensorCores busy), capped at TILE_B_MAX rows.
    b8 = max(8, _round_up(B, 8))
    if b8 >= 16:
        tile_b = min(TILE_B_MAX, _round_up(pl.cdiv(b8, 2), 8))
    else:
        tile_b = b8
    num_tiles = pl.cdiv(b8, tile_b)
    b_pad = num_tiles * tile_b

    # Only batch-pad x if needed (no K-padding; padded rows are zero).
    if b_pad != B:
        x_p = jnp.zeros((b_pad, IN_FEATURES), jnp.float32).at[:B, :].set(x)
    else:
        x_p = x

    const = lambda a: pl.BlockSpec(a.shape, lambda i: (0,) * a.ndim)

    weight_elems = (w1p.size + w2p.size + w3p.size + w4p.size
                    + b1p.size + b2p.size + b3p.size + b4p.size)
    flops = 2 * b_pad * (IN_FEATURES * H_PAD + 2 * H_PAD * H_PAD
                         + H_PAD * LOGIT_PAD)
    bytes_accessed = 4 * (b_pad * IN_FEATURES + weight_elems
                          + b_pad * NUM_CLASSES)
    cost = pl.CostEstimate(flops=flops,
                           transcendentals=b_pad * (LOGIT_PAD + 1),
                           bytes_accessed=bytes_accessed)

    out = pl.pallas_call(
        mlp_kernel,
        out_shape=jax.ShapeDtypeStruct((b_pad, NUM_CLASSES), jnp.float32),
        grid=(num_tiles,),
        in_specs=[
            pl.BlockSpec((tile_b, IN_FEATURES), lambda i: (i, 0)),  # x tiled on batch
            const(w1p), const(b1p),                                 # weights resident
            const(w2p), const(b2p),
            const(w3p), const(b3p),
            const(w4p), const(b4p),
        ],
        out_specs=pl.BlockSpec((tile_b, NUM_CLASSES), lambda i: (i, 0)),
        compiler_params=pltpu.CompilerParams(
            dimension_semantics=("parallel",)),
        cost_estimate=cost,
    )(x_p, w1p, b1p, w2p, b2p, w3p, b3p, w4p, b4p)

    return out[:B, :]


def init_params(key):
    # Deterministic init mimicking nn.Linear's U(-1/sqrt(fan_in), 1/sqrt(fan_in)).
    dims = [(IN_FEATURES, HIDDEN), (HIDDEN, HIDDEN),
            (HIDDEN, HIDDEN), (HIDDEN, NUM_CLASSES)]
    params = []
    for fan_in, fan_out in dims:
        kw, kb, key = jax.random.split(key, 3)
        bound = 1.0 / jnp.sqrt(fan_in)
        w = jax.random.uniform(kw, (fan_in, fan_out), jnp.float32, -bound, bound)
        b = jax.random.uniform(kb, (1, fan_out), jnp.float32, -bound, bound)
        params += [w, b]
    return params


def reference_forward(x, params):
    w1, b1, w2, b2, w3, b3, w4, b4 = params
    h = jnp.maximum(x @ w1 + b1, 0.0)
    h = jnp.maximum(h @ w2 + b2, 0.0)
    h = jnp.maximum(h @ w3 + b3, 0.0)
    logits = h @ w4 + b4
    return jax.nn.log_softmax(logits, axis=1)


if __name__ == "__main__":
    key = jax.random.PRNGKey(0)
    kx, kp = jax.random.split(key)
    B = 2
    x = jax.random.normal(kx, (B, IN_FEATURES), jnp.float32)
    params = init_params(kp)
    padded = pad_params(params)   # padded once, reused across calls

    out = net_forward(x, padded)
    out = jax.block_until_ready(out)

    ref = reference_forward(x, params)
    assert out.shape == (B, NUM_CLASSES)
    assert jnp.allclose(out, ref, atol=1e-5, rtol=1e-5)
    print("KERNEL_OK")
</pallas_src>

<mosaic_0001>
module attributes {stable_mosaic.version = 11 : i64} {
  func.func @mlp_kernel(%arg0: i32, %arg1: memref<8x784xf32, #tpu.memory_space<vmem>>, %arg2: memref<784x128xf32, #tpu.memory_space<vmem>>, %arg3: memref<1x128xf32, #tpu.memory_space<vmem>>, %arg4: memref<128x128xf32, #tpu.memory_space<vmem>>, %arg5: memref<1x128xf32, #tpu.memory_space<vmem>>, %arg6: memref<128x128xf32, #tpu.memory_space<vmem>>, %arg7: memref<1x128xf32, #tpu.memory_space<vmem>>, %arg8: memref<128x128xf32, #tpu.memory_space<vmem>>, %arg9: memref<1x128xf32, #tpu.memory_space<vmem>>, %arg10: memref<8x10xf32, #tpu.memory_space<vmem>>) attributes {dimension_semantics = [#tpu.dimension_semantics<parallel>], iteration_bounds = array<i64: 1>, scalar_prefetch = 0 : i64, scratch_operands = 0 : i64, tpu.core_type = #tpu.core_type<tc>, window_params = [{transform_indices = @transform_0, window_bounds = array<i64: 8, 784>}, {pipeline_mode = #tpu.pipeline_mode<synchronous>, transform_indices = @transform_1, window_bounds = array<i64: 784, 128>}, {pipeline_mode = #tpu.pipeline_mode<synchronous>, transform_indices = @transform_2, window_bounds = array<i64: 1, 128>}, {pipeline_mode = #tpu.pipeline_mode<synchronous>, transform_indices = @transform_3, window_bounds = array<i64: 128, 128>}, {pipeline_mode = #tpu.pipeline_mode<synchronous>, transform_indices = @transform_4, window_bounds = array<i64: 1, 128>}, {pipeline_mode = #tpu.pipeline_mode<synchronous>, transform_indices = @transform_5, window_bounds = array<i64: 128, 128>}, {pipeline_mode = #tpu.pipeline_mode<synchronous>, transform_indices = @transform_6, window_bounds = array<i64: 1, 128>}, {pipeline_mode = #tpu.pipeline_mode<synchronous>, transform_indices = @transform_7, window_bounds = array<i64: 128, 128>}, {pipeline_mode = #tpu.pipeline_mode<synchronous>, transform_indices = @transform_8, window_bounds = array<i64: 1, 128>}, {transform_indices = @transform_9, window_bounds = array<i64: 8, 10>}]} {
    %c0 = arith.constant 0 : index
    %c0_0 = arith.constant 0 : index
    %0 = vector.load %arg1[%c0, %c0_0] : memref<8x784xf32, #tpu.memory_space<vmem>>, vector<8x784xf32>
    %c0_1 = arith.constant 0 : index
    %c0_2 = arith.constant 0 : index
    %1 = vector.load %arg2[%c0_1, %c0_2] : memref<784x128xf32, #tpu.memory_space<vmem>>, vector<784x128xf32>
    %cst = arith.constant dense<0.000000e+00> : vector<8x128xf32>
    %2 = tpu.matmul %0, %1, %cst {dimension_numbers = #tpu.dot_dimension_numbers<[1], [0], [0], [1], [0, 0, 1, 1], [], []>} : vector<8x784xf32>, vector<784x128xf32>, vector<8x128xf32> -> vector<8x128xf32>
    %c0_3 = arith.constant 0 : index
    %c0_4 = arith.constant 0 : index
    %3 = vector.load %arg3[%c0_3, %c0_4] : memref<1x128xf32, #tpu.memory_space<vmem>>, vector<1x128xf32>
    %4 = vector.broadcast %3 : vector<1x128xf32> to vector<8x128xf32>
    %5 = arith.addf %2, %4 : vector<8x128xf32>
    %cst_5 = arith.constant 0.000000e+00 : f32
    %6 = vector.broadcast %cst_5 : f32 to vector<8x128xf32>
    %7 = arith.maximumf %5, %6 : vector<8x128xf32>
    %c0_6 = arith.constant 0 : index
    %c0_7 = arith.constant 0 : index
    %8 = vector.load %arg4[%c0_6, %c0_7] : memref<128x128xf32, #tpu.memory_space<vmem>>, vector<128x128xf32>
    %cst_8 = arith.constant dense<0.000000e+00> : vector<8x128xf32>
    %9 = tpu.matmul %7, %8, %cst_8 {dimension_numbers = #tpu.dot_dimension_numbers<[1], [0], [0], [1], [0, 0, 1, 1], [], []>} : vector<8x128xf32>, vector<128x128xf32>, vector<8x128xf32> -> vector<8x128xf32>
    %c0_9 = arith.constant 0 : index
    %c0_10 = arith.constant 0 : index
    %10 = vector.load %arg5[%c0_9, %c0_10] : memref<1x128xf32, #tpu.memory_space<vmem>>, vector<1x128xf32>
    %11 = vector.broadcast %10 : vector<1x128xf32> to vector<8x128xf32>
    %12 = arith.addf %9, %11 : vector<8x128xf32>
    %cst_11 = arith.constant 0.000000e+00 : f32
    %13 = vector.broadcast %cst_11 : f32 to vector<8x128xf32>
    %14 = arith.maximumf %12, %13 : vector<8x128xf32>
    %c0_12 = arith.constant 0 : index
    %c0_13 = arith.constant 0 : index
    %15 = vector.load %arg6[%c0_12, %c0_13] : memref<128x128xf32, #tpu.memory_space<vmem>>, vector<128x128xf32>
    %cst_14 = arith.constant dense<0.000000e+00> : vector<8x128xf32>
    %16 = tpu.matmul %14, %15, %cst_14 {dimension_numbers = #tpu.dot_dimension_numbers<[1], [0], [0], [1], [0, 0, 1, 1], [], []>} : vector<8x128xf32>, vector<128x128xf32>, vector<8x128xf32> -> vector<8x128xf32>
    %c0_15 = arith.constant 0 : index
    %c0_16 = arith.constant 0 : index
    %17 = vector.load %arg7[%c0_15, %c0_16] : memref<1x128xf32, #tpu.memory_space<vmem>>, vector<1x128xf32>
    %18 = vector.broadcast %17 : vector<1x128xf32> to vector<8x128xf32>
    %19 = arith.addf %16, %18 : vector<8x128xf32>
    %cst_17 = arith.constant 0.000000e+00 : f32
    %20 = vector.broadcast %cst_17 : f32 to vector<8x128xf32>
    %21 = arith.maximumf %19, %20 : vector<8x128xf32>
    %c0_18 = arith.constant 0 : index
    %c0_19 = arith.constant 0 : index
    %22 = vector.load %arg8[%c0_18, %c0_19] : memref<128x128xf32, #tpu.memory_space<vmem>>, vector<128x128xf32>
    %cst_20 = arith.constant dense<0.000000e+00> : vector<8x128xf32>
    %23 = tpu.matmul %21, %22, %cst_20 {dimension_numbers = #tpu.dot_dimension_numbers<[1], [0], [0], [1], [0, 0, 1, 1], [], []>} : vector<8x128xf32>, vector<128x128xf32>, vector<8x128xf32> -> vector<8x128xf32>
    %c0_21 = arith.constant 0 : index
    %c0_22 = arith.constant 0 : index
    %24 = vector.load %arg9[%c0_21, %c0_22] : memref<1x128xf32, #tpu.memory_space<vmem>>, vector<1x128xf32>
    %25 = vector.broadcast %24 : vector<1x128xf32> to vector<8x128xf32>
    %26 = arith.addf %23, %25 : vector<8x128xf32>
    %27 = tpu.iota {dimensions = array<i32: 1>} : vector<8x128xi32>
    %c10_i32 = arith.constant 10 : i32
    %28 = vector.broadcast %c10_i32 : i32 to vector<8x128xi32>
    %29 = arith.cmpi slt, %27, %28 : vector<8x128xi32>
    %cst_23 = arith.constant -1.000000e+30 : f32
    %30 = vector.broadcast %cst_23 : f32 to vector<8x128xf32>
    %31 = arith.select %29, %26, %30 : vector<8x128xi1>, vector<8x128xf32>
    %cst_24 = arith.constant dense<0xFF800000> : vector<8xf32>
    %32 = vector.multi_reduction <maximumf>, %31, %cst_24 [1] : vector<8x128xf32> to vector<8xf32>
    %33 = vector.shape_cast %32 : vector<8xf32> to vector<8x1xf32>
    %34 = vector.broadcast %33 : vector<8x1xf32> to vector<8x128xf32>
    %35 = arith.subf %31, %34 : vector<8x128xf32>
    %36 = math.exp %35 : vector<8x128xf32>
    %cst_25 = arith.constant dense<0.000000e+00> : vector<8xf32>
    %37 = vector.multi_reduction <add>, %36, %cst_25 [1] : vector<8x128xf32> to vector<8xf32>
    %38 = vector.shape_cast %37 : vector<8xf32> to vector<8x1xf32>
    %39 = math.log %38 : vector<8x1xf32>
    %40 = vector.broadcast %39 : vector<8x1xf32> to vector<8x128xf32>
    %41 = arith.subf %35, %40 : vector<8x128xf32>
    %42 = vector.extract_strided_slice %41 {offsets = [0, 0], sizes = [8, 10], strides = [1, 1]} : vector<8x128xf32> to vector<8x10xf32>
    %c0_26 = arith.constant 0 : index
    %c0_27 = arith.constant 0 : index
    %43 = vector.load %arg10[%c0_26, %c0_27] : memref<8x10xf32, #tpu.memory_space<vmem>>, vector<8x10xf32>
    tpu.vector_store %arg10[%c0_26, %c0_27], %42 {strides = array<i32>} : memref<8x10xf32, #tpu.memory_space<vmem>>, vector<8x10xf32>,
    return
  }
  func.func @transform_0(%arg0: i32) -> (i32, i32) {
    %c0_i32 = arith.constant 0 : i32
    %c0_i32_0 = arith.constant 0 : i32
    return %arg0, %c0_i32 : i32, i32
  }
  func.func @transform_1(%arg0: i32) -> (i32, i32) {
    %c0_i32 = arith.constant 0 : i32
    %c0_i32_0 = arith.constant 0 : i32
    %c0_i32_1 = arith.constant 0 : i32
    return %c0_i32, %c0_i32_0 : i32, i32
  }
  func.func @transform_2(%arg0: i32) -> (i32, i32) {
    %c0_i32 = arith.constant 0 : i32
    %c0_i32_0 = arith.constant 0 : i32
    %c0_i32_1 = arith.constant 0 : i32
    return %c0_i32, %c0_i32_0 : i32, i32
  }
  func.func @transform_3(%arg0: i32) -> (i32, i32) {
    %c0_i32 = arith.constant 0 : i32
    %c0_i32_0 = arith.constant 0 : i32
    %c0_i32_1 = arith.constant 0 : i32
    return %c0_i32, %c0_i32_0 : i32, i32
  }
  func.func @transform_4(%arg0: i32) -> (i32, i32) {
    %c0_i32 = arith.constant 0 : i32
    %c0_i32_0 = arith.constant 0 : i32
    %c0_i32_1 = arith.constant 0 : i32
    return %c0_i32, %c0_i32_0 : i32, i32
  }
  func.func @transform_5(%arg0: i32) -> (i32, i32) {
    %c0_i32 = arith.constant 0 : i32
    %c0_i32_0 = arith.constant 0 : i32
    %c0_i32_1 = arith.constant 0 : i32
    return %c0_i32, %c0_i32_0 : i32, i32
  }
  func.func @transform_6(%arg0: i32) -> (i32, i32) {
    %c0_i32 = arith.constant 0 : i32
    %c0_i32_0 = arith.constant 0 : i32
    %c0_i32_1 = arith.constant 0 : i32
    return %c0_i32, %c0_i32_0 : i32, i32
  }
  func.func @transform_7(%arg0: i32) -> (i32, i32) {
    %c0_i32 = arith.constant 0 : i32
    %c0_i32_0 = arith.constant 0 : i32
    %c0_i32_1 = arith.constant 0 : i32
    return %c0_i32, %c0_i32_0 : i32, i32
  }
  func.func @transform_8(%arg0: i32) -> (i32, i32) {
    %c0_i32 = arith.constant 0 : i32
    %c0_i32_0 = arith.constant 0 : i32
    %c0_i32_1 = arith.constant 0 : i32
    return %c0_i32, %c0_i32_0 : i32, i32
  }
  func.func @transform_9(%arg0: i32) -> (i32, i32) {
    %c0_i32 = arith.constant 0 : i32
    %c0_i32_0 = arith.constant 0 : i32
    return %arg0, %c0_i32 : i32, i32
  }
}

</mosaic_0001>

<llo_original>
// kernel: net_forward.1
$region0: #{net_forward.1}
  #allocation0 [shape = 'u32[]', space=smem, size = 0x4, offset = 0x4, fixed_abs, tag = 'smem constant byte address 0x4 - core index']
  #allocation1 [shape = 'u32[72,128]{1,0:T(1,128)}', space=vmem, size = 0x9000, scoped, tag = 'internal scratch']
  %s0 = inlined_call_operand.vmem [shape: f32[8,784], index: 0, kind: input, shape index: {}]
  %s1 = inlined_call_operand.hbm [shape: f32[784,128], index: 1, kind: input, shape index: {}]
  %s2 = inlined_call_operand.vmem [shape: f32[1,128], index: 2, kind: input, shape index: {}]
  %s3 = inlined_call_operand.hbm [shape: f32[128,128], index: 3, kind: input, shape index: {}]
  %s4 = inlined_call_operand.vmem [shape: f32[1,128], index: 4, kind: input, shape index: {}]
  %s5 = inlined_call_operand.hbm [shape: f32[128,128], index: 5, kind: input, shape index: {}]
  %s6 = inlined_call_operand.vmem [shape: f32[1,128], index: 6, kind: input, shape index: {}]
  %s7 = inlined_call_operand.hbm [shape: f32[128,128], index: 7, kind: input, shape index: {}]
  %s8 = inlined_call_operand.vmem [shape: f32[1,128], index: 8, kind: input, shape index: {}]
  %s9 = inlined_call_operand.vmem [shape: f32[8,10], index: 9, kind: output, shape index: {}]
  %s10 = sld [smem:[#allocation0]]
  $region62: #{net_forward.1} parent=0
    _
  %s12 = ssub.s32 1, %s10
  %s13 = scalar_select 0, %s12, %s10
  $region1: #{net_forward.1} parent=0
    #allocation2 [shape = 'u8[401408]{0}', space=vmem, size = 0x62000, scoped, tag = 'input window, operand 1, single buffered']
    #allocation3 [shape = 's32[1]{0}', space=sflag, size = 0x4, scoped, tag = 'scoped memory for net_forward.1']
    #allocation4 [shape = 'u8[65536]{0}', space=vmem, size = 0x10000, scoped, tag = 'input window, operand 3, single buffered']
    #allocation5 [shape = 's32[1]{0}', space=sflag, size = 0x4, scoped, tag = 'scoped memory for net_forward.1']
    #allocation6 [shape = 'u8[65536]{0}', space=vmem, size = 0x10000, scoped, tag = 'input window, operand 5, single buffered']
    #allocation7 [shape = 'u8[65536]{0}', space=vmem, size = 0x10000, scoped, tag = 'input window, operand 7, single buffered']
    #allocation8 [shape = 's32[1]{0}', space=sflag, size = 0x4, scoped, tag = 'scoped memory for net_forward.1']
    %14 = vsyncpa [#allocation3], 0
    %15 = vsyncpa [#allocation5], 0
    %16 = vsyncpa [#allocation8], 0
    // Predicated region
    $region2: #{net_forward.1} parent=1 // pred_check
      _
    $region3: #{net_forward.1} parent=1 // pred_check_branch
      %18 = sbr.rel (0) target = $region5
    $region4: #{net_forward.1} parent=1 // pred_region
      _
    $region5: #{net_forward.1} parent=1 // pred_fallthru
      _
    // Predicated region
    $region6: #{net_forward.1} parent=1 // pred_check
      _
    $region7: #{net_forward.1} parent=1 // pred_check_branch
      %20 = sbr.rel (0) target = $region9
    $region8: #{net_forward.1} parent=1 // pred_region
      %22 = vsyncadd [#allocation3], 0
      %s23 = sshll.u32 %s1, 4
      %s24 = int_to_ptr.hbm [resolvable:$true] %s23
      %s25 = sshll.u32 [#allocation2], 4
      %s26 = int_to_ptr.vmem [resolvable:$true] %s25
      %31 = dma.hbm_to_vmem [thread:$0]  %s24, 12544, %s26, [#allocation3], 128, 128, 8
    $region9: #{net_forward.1} parent=1 // pred_fallthru
      _
    // Predicated region
    $region10: #{net_forward.1} parent=1 // pred_check
      _
    $region11: #{net_forward.1} parent=1 // pred_check_branch
      %33 = sbr.rel (0) target = $region13
    $region12: #{net_forward.1} parent=1 // pred_region
      _
    $region13: #{net_forward.1} parent=1 // pred_fallthru
      _
    // Predicated region
    $region14: #{net_forward.1} parent=1 // pred_check
      _
    $region15: #{net_forward.1} parent=1 // pred_check_branch
      %35 = sbr.rel (0) target = $region17
    $region16: #{net_forward.1} parent=1 // pred_region
      %37 = vsyncadd [#allocation5], 0
      %s38 = sshll.u32 %s3, 4
      %s39 = int_to_ptr.hbm [resolvable:$true] %s38
      %s40 = sshll.u32 [#allocation4], 4
      %s41 = int_to_ptr.vmem [resolvable:$true] %s40
      %46 = dma.hbm_to_vmem [thread:$0]  %s39, 2048, %s41, [#allocation5], 128, 128, 8
    $region17: #{net_forward.1} parent=1 // pred_fallthru
      _
    // Predicated region
    $region18: #{net_forward.1} parent=1 // pred_check
      _
    $region19: #{net_forward.1} parent=1 // pred_check_branch
      %48 = sbr.rel (0) target = $region21
    $region20: #{net_forward.1} parent=1 // pred_region
      _
    $region21: #{net_forward.1} parent=1 // pred_fallthru
      _
    // Predicated region
    $region22: #{net_forward.1} parent=1 // pred_check
      _
    $region23: #{net_forward.1} parent=1 // pred_check_branch
      %50 = sbr.rel (0) target = $region25
    $region24: #{net_forward.1} parent=1 // pred_region
      %52 = vsyncadd [#allocation5], 0
      %s53 = sshll.u32 %s5, 4
      %s54 = int_to_ptr.hbm [resolvable:$true] %s53
      %s55 = sshll.u32 [#allocation6], 4
      %s56 = int_to_ptr.vmem [resolvable:$true] %s55
      %61 = dma.hbm_to_vmem [thread:$0]  %s54, 2048, %s56, [#allocation5], 128, 128, 8
    $region25: #{net_forward.1} parent=1 // pred_fallthru
      _
    // Predicated region
    $region26: #{net_forward.1} parent=1 // pred_check
      _
    $region27: #{net_forward.1} parent=1 // pred_check_branch
      %63 = sbr.rel (0) target = $region29
    $region28: #{net_forward.1} parent=1 // pred_region
      _
    $region29: #{net_forward.1} parent=1 // pred_fallthru
      _
    // Predicated region
    $region30: #{net_forward.1} parent=1 // pred_check
      _
    $region31: #{net_forward.1} parent=1 // pred_check_branch
      %65 = sbr.rel (0) target = $region33
    $region32: #{net_forward.1} parent=1 // pred_region
      %67 = vsyncadd [#allocation8], 0
      %s68 = sshll.u32 %s7, 4
      %s69 = int_to_ptr.hbm [resolvable:$true] %s68
      %s70 = sshll.u32 [#allocation7], 4
      %s71 = int_to_ptr.vmem [resolvable:$true] %s70
      %76 = dma.hbm_to_vmem [thread:$0]  %s69, 2048, %s71, [#allocation8], 128, 128, 8
    $region33: #{net_forward.1} parent=1 // pred_fallthru
      _
    // Predicated region
    $region34: #{net_forward.1} parent=1 // pred_check
      _
    $region35: #{net_forward.1} parent=1 // pred_check_branch
      %78 = sbr.rel (0) target = $region37
    $region36: #{net_forward.1} parent=1 // pred_region
      _
    $region37: #{net_forward.1} parent=1 // pred_fallthru
      _
    // Predicated region
    $region38: #{net_forward.1} parent=1 // pred_check
      _
    $region39: #{net_forward.1} parent=1 // pred_check_branch
      %80 = sbr.rel (0) target = $region41
    $region40: #{net_forward.1} parent=1 // pred_region
      %82 = dma.done [#allocation3], 12544
    $region41: #{net_forward.1} parent=1 // pred_fallthru
      _
    // Predicated region
    $region42: #{net_forward.1} parent=1 // pred_check
      _
    $region43: #{net_forward.1} parent=1 // pred_check_branch
      %84 = sbr.rel (0) target = $region45
    $region44: #{net_forward.1} parent=1 // pred_region
      %86 = dma.done [#allocation5], 2048
    $region45: #{net_forward.1} parent=1 // pred_fallthru
      _
    // Predicated region
    $region46: #{net_forward.1} parent=1 // pred_check
      _
    $region47: #{net_forward.1} parent=1 // pred_check_branch
      %88 = sbr.rel (0) target = $region49
    $region48: #{net_forward.1} parent=1 // pred_region
      %90 = dma.done [#allocation5], 2048
    $region49: #{net_forward.1} parent=1 // pred_fallthru
      _
    // Predicated region
    $region50: #{net_forward.1} parent=1 // pred_check
      _
    $region51: #{net_forward.1} parent=1 // pred_check_branch
      %92 = sbr.rel (0) target = $region53
    $region52: #{net_forward.1} parent=1 // pred_region
      %94 = dma.done [#allocation8], 2048
    $region53: #{net_forward.1} parent=1 // pred_fallthru
      _
    %v95 = vld [vmem:[%s0] sm:$0xff]
    %v96 = vld [vmem:[%s0 + $0x8] sm:$0xff]
    %v97 = vld [vmem:[%s0 + $0x10] sm:$0xff]
    %v98 = vld [vmem:[%s0 + $0x18] sm:$0xff]
    %v99 = vld [vmem:[%s0 + $0x20] sm:$0xff]
    %v100 = vld [vmem:[%s0 + $0x28] sm:$0xff]
    %v101 = vld [vmem:[%s0 + $0x30] sm:$0xff]
    %v102 = vld [vmem:[#allocation2] sm:$0xff]
    %v103 = vld [vmem:[#allocation2 + $0x8] sm:$0xff]
    %v104 = vld [vmem:[#allocation2 + $0x10] sm:$0xff]
    %v105 = vld [vmem:[#allocation2 + $0x18] sm:$0xff]
    %v106 = vld [vmem:[#allocation2 + $0x20] sm:$0xff]
    %v107 = vld [vmem:[#allocation2 + $0x28] sm:$0xff]
    %v108 = vld [vmem:[#allocation2 + $0x30] sm:$0xff]
    %v109 = vld [vmem:[#allocation2 + $0x38] sm:$0xff]
    %v110 = vld [vmem:[#allocation2 + $0x40] sm:$0xff]
    %v111 = vld [vmem:[#allocation2 + $0x48] sm:$0xff]
    %v112 = vld [vmem:[#allocation2 + $0x50] sm:$0xff]
    %v113 = vld [vmem:[#allocation2 + $0x58] sm:$0xff]
    %v114 = vld [vmem:[#allocation2 + $0x60] sm:$0xff]
    %v115 = vld [vmem:[#allocation2 + $0x68] sm:$0xff]
    %v116 = vld [vmem:[#allocation2 + $0x70] sm:$0xff]
    %v117 = vld [vmem:[#allocation2 + $0x78] sm:$0xff]
    %v118 = vld [vmem:[#allocation2 + $0x80] sm:$0xff]
    %v119 = vld [vmem:[#allocation2 + $0x88] sm:$0xff]
    %v120 = vld [vmem:[#allocation2 + $0x90] sm:$0xff]
    %v121 = vld [vmem:[#allocation2 + $0x98] sm:$0xff]
    %v122 = vld [vmem:[#allocation2 + $0xa0] sm:$0xff]
    %v123 = vld [vmem:[#allocation2 + $0xa8] sm:$0xff]
    %v124 = vld [vmem:[#allocation2 + $0xb0] sm:$0xff]
    %v125 = vld [vmem:[#allocation2 + $0xb8] sm:$0xff]
    %v126 = vld [vmem:[#allocation2 + $0xc0] sm:$0xff]
    %v127 = vld [vmem:[#allocation2 + $0xc8] sm:$0xff]
    %v128 = vld [vmem:[#allocation2 + $0xd0] sm:$0xff]
    %v129 = vld [vmem:[#allocation2 + $0xd8] sm:$0xff]
    %v130 = vld [vmem:[#allocation2 + $0xe0] sm:$0xff]
    %v131 = vld [vmem:[#allocation2 + $0xe8] sm:$0xff]
    %v132 = vld [vmem:[#allocation2 + $0xf0] sm:$0xff]
    %v133 = vld [vmem:[#allocation2 + $0xf8] sm:$0xff]
    %v134 = vld [vmem:[#allocation2 + $0x100] sm:$0xff]
    %v135 = vld [vmem:[#allocation2 + $0x108] sm:$0xff]
    %v136 = vld [vmem:[#allocation2 + $0x110] sm:$0xff]
    %v137 = vld [vmem:[#allocation2 + $0x118] sm:$0xff]
    %v138 = vld [vmem:[#allocation2 + $0x120] sm:$0xff]
    %v139 = vld [vmem:[#allocation2 + $0x128] sm:$0xff]
    %v140 = vld [vmem:[#allocation2 + $0x130] sm:$0xff]
    %v141 = vld [vmem:[#allocation2 + $0x138] sm:$0xff]
    %v142 = vld [vmem:[#allocation2 + $0x140] sm:$0xff]
    %v143 = vld [vmem:[#allocation2 + $0x148] sm:$0xff]
    %v144 = vld [vmem:[#allocation2 + $0x150] sm:$0xff]
    %v145 = vld [vmem:[#allocation2 + $0x158] sm:$0xff]
    %v146 = vld [vmem:[#allocation2 + $0x160] sm:$0xff]
    %v147 = vld [vmem:[#allocation2 + $0x168] sm:$0xff]
    %v148 = vld [vmem:[#allocation2 + $0x170] sm:$0xff]
    %v149 = vld [vmem:[#allocation2 + $0x178] sm:$0xff]
    %v150 = vld [vmem:[#allocation2 + $0x180] sm:$0xff]
    %v151 = vld [vmem:[#allocation2 + $0x188] sm:$0xff]
    %v152 = vld [vmem:[#allocation2 + $0x190] sm:$0xff]
    %v153 = vld [vmem:[#allocation2 + $0x198] sm:$0xff]
    %v154 = vld [vmem:[#allocation2 + $0x1a0] sm:$0xff]
    %v155 = vld [vmem:[#allocation2 + $0x1a8] sm:$0xff]
    %v156 = vld [vmem:[#allocation2 + $0x1b0] sm:$0xff]
    %v157 = vld [vmem:[#allocation2 + $0x1b8] sm:$0xff]
    %v158 = vld [vmem:[#allocation2 + $0x1c0] sm:$0xff]
    %v159 = vld [vmem:[#allocation2 + $0x1c8] sm:$0xff]
    %v160 = vld [vmem:[#allocation2 + $0x1d0] sm:$0xff]
    %v161 = vld [vmem:[#allocation2 + $0x1d8] sm:$0xff]
    %v162 = vld [vmem:[#allocation2 + $0x1e0] sm:$0xff]
    %v163 = vld [vmem:[#allocation2 + $0x1e8] sm:$0xff]
    %v164 = vld [vmem:[#allocation2 + $0x1f0] sm:$0xff]
    %v165 = vld [vmem:[#allocation2 + $0x1f8] sm:$0xff]
    %v166 = vld [vmem:[#allocation2 + $0x200] sm:$0xff]
    %v167 = vld [vmem:[#allocation2 + $0x208] sm:$0xff]
    %v168 = vld [vmem:[#allocation2 + $0x210] sm:$0xff]
    %v169 = vld [vmem:[#allocation2 + $0x218] sm:$0xff]
    %v170 = vld [vmem:[#allocation2 + $0x220] sm:$0xff]
    %v171 = vld [vmem:[#allocation2 + $0x228] sm:$0xff]
    %v172 = vld [vmem:[#allocation2 + $0x230] sm:$0xff]
    %v173 = vld [vmem:[#allocation2 + $0x238] sm:$0xff]
    %v174 = vld [vmem:[#allocation2 + $0x240] sm:$0xff]
    %v175 = vld [vmem:[#allocation2 + $0x248] sm:$0xff]
    %v176 = vld [vmem:[#allocation2 + $0x250] sm:$0xff]
    %v177 = vld [vmem:[#allocation2 + $0x258] sm:$0xff]
    %v178 = vld [vmem:[#allocation2 + $0x260] sm:$0xff]
    %v179 = vld [vmem:[#allocation2 + $0x268] sm:$0xff]
    %v180 = vld [vmem:[#allocation2 + $0x270] sm:$0xff]
    %v181 = vld [vmem:[#allocation2 + $0x278] sm:$0xff]
    %v182 = vld [vmem:[#allocation2 + $0x280] sm:$0xff]
    %v183 = vld [vmem:[#allocation2 + $0x288] sm:$0xff]
    %v184 = vld [vmem:[#allocation2 + $0x290] sm:$0xff]
    %v185 = vld [vmem:[#allocation2 + $0x298] sm:$0xff]
    %v186 = vld [vmem:[#allocation2 + $0x2a0] sm:$0xff]
    %v187 = vld [vmem:[#allocation2 + $0x2a8] sm:$0xff]
    %v188 = vld [vmem:[#allocation2 + $0x2b0] sm:$0xff]
    %v189 = vld [vmem:[#allocation2 + $0x2b8] sm:$0xff]
    %v190 = vld [vmem:[#allocation2 + $0x2c0] sm:$0xff]
    %v191 = vld [vmem:[#allocation2 + $0x2c8] sm:$0xff]
    %v192 = vld [vmem:[#allocation2 + $0x2d0] sm:$0xff]
    %v193 = vld [vmem:[#allocation2 + $0x2d8] sm:$0xff]
    %v194 = vld [vmem:[#allocation2 + $0x2e0] sm:$0xff]
    %v195 = vld [vmem:[#allocation2 + $0x2e8] sm:$0xff]
    %v196 = vld [vmem:[#allocation2 + $0x2f0] sm:$0xff]
    %v197 = vld [vmem:[#allocation2 + $0x2f8] sm:$0xff]
    %v198 = vld [vmem:[#allocation2 + $0x300] sm:$0xff]
    %v199 = vld [vmem:[#allocation2 + $0x308] sm:$0xff]
    %v200 = vld [vmem:[%s2] sm:$0x1]
    %v202 = vperm.slane %v200, 0
    %vm204 = vcmask 130048
    %v206 = vsel %vm204, %v101, 0
    %208 = vmatpush.msra.mxu0 %v117
    %209 = vmatpush.msra.mxu0 %v116
    %210 = vmatpush.msra.mxu0 %v115
    %211 = vmatpush.msra.mxu0 %v114
    %212 = vmatpush.msra.mxu0 %v113
    %213 = vmatpush.msra.mxu0 %v112
    %214 = vmatpush.msra.mxu0 %v111
    %215 = vmatpush.msra.mxu0 %v110
    %216 = vmatpush.msra.mxu0 %v109
    %217 = vmatpush.msra.mxu0 %v108
    %218 = vmatpush.msra.mxu0 %v107
    %219 = vmatpush.msra.mxu0 %v106
    %220 = vmatpush.msra.mxu0 %v105
    %221 = vmatpush.msra.mxu0 %v104
    %222 = vmatpush.msra.mxu0 %v103
    %223 = vmatpush.msra.mxu0 %v102
    %224 = vmatmul.f32.gmra.mxu0 %v95
    %v225 = vpop.f32.mrf.mxu0
    %v226 = vadd.f32 %v202, %v225
    %227 = vdwg.mxu0
    %228 = vmatpush.msra.mxu0 %v133
    %229 = vmatpush.msra.mxu0 %v132
    %230 = vmatpush.msra.mxu0 %v131
    %231 = vmatpush.msra.mxu0 %v130
    %232 = vmatpush.msra.mxu0 %v129
    %233 = vmatpush.msra.mxu0 %v128
    %234 = vmatpush.msra.mxu0 %v127
    %235 = vmatpush.msra.mxu0 %v126
    %236 = vmatpush.msra.mxu0 %v125
    %237 = vmatpush.msra.mxu0 %v124
    %238 = vmatpush.msra.mxu0 %v123
    %239 = vmatpush.msra.mxu0 %v122
    %240 = vmatpush.msra.mxu0 %v121
    %241 = vmatpush.msra.mxu0 %v120
    %242 = vmatpush.msra.mxu0 %v119
    %243 = vmatpush.msra.mxu0 %v118
    %244 = vmatmul.f32.gmra.mxu0 %v96
    %v245 = vpop.f32.mrf.mxu0
    %v246 = vadd.f32 %v226, %v245
    %247 = vdwg.mxu0
    %248 = vmatpush.msra.mxu0 %v149
    %249 = vmatpush.msra.mxu0 %v148
    %250 = vmatpush.msra.mxu0 %v147
    %251 = vmatpush.msra.mxu0 %v146
    %252 = vmatpush.msra.mxu0 %v145
    %253 = vmatpush.msra.mxu0 %v144
    %254 = vmatpush.msra.mxu0 %v143
    %255 = vmatpush.msra.mxu0 %v142
    %256 = vmatpush.msra.mxu0 %v141
    %257 = vmatpush.msra.mxu0 %v140
    %258 = vmatpush.msra.mxu0 %v139
    %259 = vmatpush.msra.mxu0 %v138
    %260 = vmatpush.msra.mxu0 %v137
    %261 = vmatpush.msra.mxu0 %v136
    %262 = vmatpush.msra.mxu0 %v135
    %263 = vmatpush.msra.mxu0 %v134
    %264 = vmatmul.f32.gmra.mxu0 %v97
    %v265 = vpop.f32.mrf.mxu0
    %v266 = vadd.f32 %v246, %v265
    %267 = vdwg.mxu0
    %268 = vmatpush.msra.mxu0 %v165
    %269 = vmatpush.msra.mxu0 %v164
    %270 = vmatpush.msra.mxu0 %v163
    %271 = vmatpush.msra.mxu0 %v162
    %272 = vmatpush.msra.mxu0 %v161
    %273 = vmatpush.msra.mxu0 %v160
    %274 = vmatpush.msra.mxu0 %v159
    %275 = vmatpush.msra.mxu0 %v158
    %276 = vmatpush.msra.mxu0 %v157
    %277 = vmatpush.msra.mxu0 %v156
    %278 = vmatpush.msra.mxu0 %v155
    %279 = vmatpush.msra.mxu0 %v154
    %280 = vmatpush.msra.mxu0 %v153
    %281 = vmatpush.msra.mxu0 %v152
    %282 = vmatpush.msra.mxu0 %v151
    %283 = vmatpush.msra.mxu0 %v150
    %284 = vmatmul.f32.gmra.mxu0 %v98
    %v285 = vpop.f32.mrf.mxu0
    %v286 = vadd.f32 %v266, %v285
    %287 = vdwg.mxu0
    %288 = vmatpush.msra.mxu0 %v181
    %289 = vmatpush.msra.mxu0 %v180
    %290 = vmatpush.msra.mxu0 %v179
    %291 = vmatpush.msra.mxu0 %v178
    %292 = vmatpush.msra.mxu0 %v177
    %293 = vmatpush.msra.mxu0 %v176
    %294 = vmatpush.msra.mxu0 %v175
    %295 = vmatpush.msra.mxu0 %v174
    %296 = vmatpush.msra.mxu0 %v173
    %297 = vmatpush.msra.mxu0 %v172
    %298 = vmatpush.msra.mxu0 %v171
    %299 = vmatpush.msra.mxu0 %v170
    %300 = vmatpush.msra.mxu0 %v169
    %301 = vmatpush.msra.mxu0 %v168
    %302 = vmatpush.msra.mxu0 %v167
    %303 = vmatpush.msra.mxu0 %v166
    %304 = vmatmul.f32.gmra.mxu0 %v99
    %v305 = vpop.f32.mrf.mxu0
    %v306 = vadd.f32 %v286, %v305
    %307 = vdwg.mxu0
    %308 = vmatpush.msra.mxu0 %v197
    %309 = vmatpush.msra.mxu0 %v196
    %310 = vmatpush.msra.mxu0 %v195
    %311 = vmatpush.msra.mxu0 %v194
    %312 = vmatpush.msra.mxu0 %v193
    %313 = vmatpush.msra.mxu0 %v192
    %314 = vmatpush.msra.mxu0 %v191
    %315 = vmatpush.msra.mxu0 %v190
    %316 = vmatpush.msra.mxu0 %v189
    %317 = vmatpush.msra.mxu0 %v188
    %318 = vmatpush.msra.mxu0 %v187
    %319 = vmatpush.msra.mxu0 %v186
    %320 = vmatpush.msra.mxu0 %v185
    %321 = vmatpush.msra.mxu0 %v184
    %322 = vmatpush.msra.mxu0 %v183
    %323 = vmatpush.msra.mxu0 %v182
    %324 = vmatmul.f32.gmra.mxu0 %v100
    %v325 = vpop.f32.mrf.mxu0
    %v326 = vadd.f32 %v306, %v325
    %327 = vdwg.mxu0
    %328 = vmatpush.msra.mxu0 0.0
    %329 = vmatpush.msra.mxu0 0.0
    %330 = vmatpush.msra.mxu0 0.0
    %331 = vmatpush.msra.mxu0 0.0
    %332 = vmatpush.msra.mxu0 0.0
    %333 = vmatpush.msra.mxu0 0.0
    %334 = vmatpush.msra.mxu0 0.0
    %335 = vmatpush.msra.mxu0 0.0
    %336 = vmatpush.msra.mxu0 0.0
    %337 = vmatpush.msra.mxu0 0.0
    %338 = vmatpush.msra.mxu0 0.0
    %339 = vmatpush.msra.mxu0 0.0
    %340 = vmatpush.msra.mxu0 0.0
    %341 = vmatpush.msra.mxu0 0.0
    %342 = vmatpush.msra.mxu0 %v199
    %343 = vmatpush.msra.mxu0 %v198
    %344 = vmatmul.f32.gmra.mxu0 %v206
    %v345 = vpop.f32.mrf.mxu0
    %v346 = vadd.f32 %v326, %v345
    %347 = vdwg.mxu0
    %v348 = vmax.f32 %v346, 0.0
    %v349 = vld [vmem:[#allocation4] sm:$0xff]
    %v350 = vld [vmem:[#allocation4 + $0x8] sm:$0xff]
    %v351 = vld [vmem:[#allocation4 + $0x10] sm:$0xff]
    %v352 = vld [vmem:[#allocation4 + $0x18] sm:$0xff]
    %v353 = vld [vmem:[#allocation4 + $0x20] sm:$0xff]
    %v354 = vld [vmem:[#allocation4 + $0x28] sm:$0xff]
    %v355 = vld [vmem:[#allocation4 + $0x30] sm:$0xff]
    %v356 = vld [vmem:[#allocation4 + $0x38] sm:$0xff]
    %v357 = vld [vmem:[#allocation4 + $0x40] sm:$0xff]
    %v358 = vld [vmem:[#allocation4 + $0x48] sm:$0xff]
    %v359 = vld [vmem:[#allocation4 + $0x50] sm:$0xff]
    %v360 = vld [vmem:[#allocation4 + $0x58] sm:$0xff]
    %v361 = vld [vmem:[#allocation4 + $0x60] sm:$0xff]
    %v362 = vld [vmem:[#allocation4 + $0x68] sm:$0xff]
    %v363 = vld [vmem:[#allocation4 + $0x70] sm:$0xff]
    %v364 = vld [vmem:[#allocation4 + $0x78] sm:$0xff]
    %v365 = vld [vmem:[%s4] sm:$0x1]
    %v367 = vperm.slane %v365, 0
    %369 = vmatpush.msra.mxu0 %v364
    %370 = vmatpush.msra.mxu0 %v363
    %371 = vmatpush.msra.mxu0 %v362
    %372 = vmatpush.msra.mxu0 %v361
    %373 = vmatpush.msra.mxu0 %v360
    %374 = vmatpush.msra.mxu0 %v359
    %375 = vmatpush.msra.mxu0 %v358
    %376 = vmatpush.msra.mxu0 %v357
    %377 = vmatpush.msra.mxu0 %v356
    %378 = vmatpush.msra.mxu0 %v355
    %379 = vmatpush.msra.mxu0 %v354
    %380 = vmatpush.msra.mxu0 %v353
    %381 = vmatpush.msra.mxu0 %v352
    %382 = vmatpush.msra.mxu0 %v351
    %383 = vmatpush.msra.mxu0 %v350
    %384 = vmatpush.msra.mxu0 %v349
    %385 = vmatmul.f32.gmra.mxu0 %v348
    %v386 = vpop.f32.mrf.mxu0
    %v387 = vadd.f32 %v367, %v386
    %388 = vdwg.mxu0
    %v389 = vmax.f32 %v387, 0.0
    %v390 = vld [vmem:[#allocation6] sm:$0xff]
    %v391 = vld [vmem:[#allocation6 + $0x8] sm:$0xff]
    %v392 = vld [vmem:[#allocation6 + $0x10] sm:$0xff]
    %v393 = vld [vmem:[#allocation6 + $0x18] sm:$0xff]
    %v394 = vld [vmem:[#allocation6 + $0x20] sm:$0xff]
    %v395 = vld [vmem:[#allocation6 + $0x28] sm:$0xff]
    %v396 = vld [vmem:[#allocation6 + $0x30] sm:$0xff]
    %v397 = vld [vmem:[#allocation6 + $0x38] sm:$0xff]
    %v398 = vld [vmem:[#allocation6 + $0x40] sm:$0xff]
    %v399 = vld [vmem:[#allocation6 + $0x48] sm:$0xff]
    %v400 = vld [vmem:[#allocation6 + $0x50] sm:$0xff]
    %v401 = vld [vmem:[#allocation6 + $0x58] sm:$0xff]
    %v402 = vld [vmem:[#allocation6 + $0x60] sm:$0xff]
    %v403 = vld [vmem:[#allocation6 + $0x68] sm:$0xff]
    %v404 = vld [vmem:[#allocation6 + $0x70] sm:$0xff]
    %v405 = vld [vmem:[#allocation6 + $0x78] sm:$0xff]
    %v406 = vld [vmem:[%s6] sm:$0x1]
    %v408 = vperm.slane %v406, 0
    %410 = vmatpush.msra.mxu0 %v405
    %411 = vmatpush.msra.mxu0 %v404
    %412 = vmatpush.msra.mxu0 %v403
    %413 = vmatpush.msra.mxu0 %v402
    %414 = vmatpush.msra.mxu0 %v401
    %415 = vmatpush.msra.mxu0 %v400
    %416 = vmatpush.msra.mxu0 %v399
    %417 = vmatpush.msra.mxu0 %v398
    %418 = vmatpush.msra.mxu0 %v397
    %419 = vmatpush.msra.mxu0 %v396
    %420 = vmatpush.msra.mxu0 %v395
    %421 = vmatpush.msra.mxu0 %v394
    %422 = vmatpush.msra.mxu0 %v393
    %423 = vmatpush.msra.mxu0 %v392
    %424 = vmatpush.msra.mxu0 %v391
    %425 = vmatpush.msra.mxu0 %v390
    %426 = vmatmul.f32.gmra.mxu0 %v389
    %v427 = vpop.f32.mrf.mxu0
    %v428 = vadd.f32 %v408, %v427
    %429 = vdwg.mxu0
    %v430 = vmax.f32 %v428, 0.0
    %v431 = vld [vmem:[#allocation7] sm:$0xff]
    %v432 = vld [vmem:[#allocation7 + $0x8] sm:$0xff]
    %v433 = vld [vmem:[#allocation7 + $0x10] sm:$0xff]
    %v434 = vld [vmem:[#allocation7 + $0x18] sm:$0xff]
    %v435 = vld [vmem:[#allocation7 + $0x20] sm:$0xff]
    %v436 = vld [vmem:[#allocation7 + $0x28] sm:$0xff]
    %v437 = vld [vmem:[#allocation7 + $0x30] sm:$0xff]
    %v438 = vld [vmem:[#allocation7 + $0x38] sm:$0xff]
    %v439 = vld [vmem:[#allocation7 + $0x40] sm:$0xff]
    %v440 = vld [vmem:[#allocation7 + $0x48] sm:$0xff]
    %v441 = vld [vmem:[#allocation7 + $0x50] sm:$0xff]
    %v442 = vld [vmem:[#allocation7 + $0x58] sm:$0xff]
    %v443 = vld [vmem:[#allocation7 + $0x60] sm:$0xff]
    %v444 = vld [vmem:[#allocation7 + $0x68] sm:$0xff]
    %v445 = vld [vmem:[#allocation7 + $0x70] sm:$0xff]
    %v446 = vld [vmem:[#allocation7 + $0x78] sm:$0xff]
    %v447 = vld [vmem:[%s8] sm:$0x1]
    %v449 = vperm.slane %v447, 0
    %451 = vmatpush.msra.mxu0 %v446
    %452 = vmatpush.msra.mxu0 %v445
    %453 = vmatpush.msra.mxu0 %v444
    %454 = vmatpush.msra.mxu0 %v443
    %455 = vmatpush.msra.mxu0 %v442
    %456 = vmatpush.msra.mxu0 %v441
    %457 = vmatpush.msra.mxu0 %v440
    %458 = vmatpush.msra.mxu0 %v439
    %459 = vmatpush.msra.mxu0 %v438
    %460 = vmatpush.msra.mxu0 %v437
    %461 = vmatpush.msra.mxu0 %v436
    %462 = vmatpush.msra.mxu0 %v435
    %463 = vmatpush.msra.mxu0 %v434
    %464 = vmatpush.msra.mxu0 %v433
    %465 = vmatpush.msra.mxu0 %v432
    %466 = vmatpush.msra.mxu0 %v431
    %467 = vmatmul.f32.gmra.mxu0 %v430
    %v468 = vpop.f32.mrf.mxu0
    %v469 = vadd.f32 %v449, %v468
    %470 = vdwg.mxu0
    %v471 = vlaneseq
    %v472 = vand.u32 %v471, 127
    %vm473 = vcmp.lt.s32.totalorder %v472, 10
    %v474 = vsel %vm473, %v469, -1e+30
    %475 = vmax.xlane.f32.xlu0 %v474
    %v476 = vpop.xlane.xlu0 %475
    %v477 = vsub.f32 %v474, %v476
    %v478 = vmul.f32 %v477, 1.442695
    %v479 = vpow.pop %v478
    %480 = vadd.xlane.f32.xlu0 %v479
    %v481 = vpop.xlane.xlu0 %480
    %v482 = vlog2.pop %v481
    %v483 = vmul.f32 %v482, 0.6931472
    %v484 = vsub.f32 %v477, %v483
    %vm485 = vcmask 80896
    %486 = vst.msk [vmem:[%s9] sm:$0xff] %vm485, %v484
    // Predicated region
    $region54: #{net_forward.1} parent=1 // pred_check
      _
    $region55: #{net_forward.1} parent=1 // pred_check_branch
      %488 = sbr.rel (0) target = $region57
    $region56: #{net_forward.1} parent=1 // pred_region
      _
    $region57: #{net_forward.1} parent=1 // pred_fallthru
      _
    // Predicated region
    $region58: #{net_forward.1} parent=1 // pred_check
      _
    $region59: #{net_forward.1} parent=1 // pred_check_branch
      %490 = sbr.rel (0) target = $region61
    $region60: #{net_forward.1} parent=1 // pred_region
      _
    $region61: #{net_forward.1} parent=1 // pred_fallthru
      _
    %491 = vsyncpa [#allocation3], 1
    %492 = vsyncpa [#allocation5], 1
    %493 = vsyncpa [#allocation8], 1

</llo_original>
